<compile_context>
chip_gen: v7x
topology: tpu7x:2x2x1
jax: 0.10.0
libtpu: 0.0.40
codegen_flags: <defaults>
</compile_context>

<pallas_src>
import math

import jax
import jax.numpy as jnp
from jax.experimental import pallas as pl
from jax.experimental.pallas import tpu as pltpu

_LANES = 128
_TARGET_BLOCK_BYTES = 2 * 1024 * 1024  # per ref per buffer (v7x-safe)


def _complex_mul_pallas(x_fft, w_fft):
    """Elementwise x_fft * w_fft (complex), broadcasting on the leading axis.

    The leading-axis broadcast (N vs Cout) is done inside the kernel: the
    smaller operand is DMA'd at its natural size and replicated in-register,
    never materialized in HBM.
    """
    assert x_fft.ndim == w_fft.ndim, (x_fft.shape, w_fft.shape)
    bshape = jnp.broadcast_shapes(x_fft.shape, w_fft.shape)
    inner = bshape[1:]

    # Reference semantics only need broadcasting on the leading axis
    # (kernel_size == padded spatial size).  Any other broadcast is a cold
    # path: materialize it so the kernel always sees matching trailing dims.
    if x_fft.shape[1:] != inner:
        x_fft = jnp.broadcast_to(x_fft, (x_fft.shape[0],) + inner)
    if w_fft.shape[1:] != inner:
        w_fft = jnp.broadcast_to(w_fft, (w_fft.shape[0],) + inner)

    n_lead = x_fft.shape[0]
    w_lead = w_fft.shape[0]
    l_lead = bshape[0]
    p = math.prod(inner)  # complex elements per leading index

    def slab(v):
        # (lead, *inner) complex -> (2*lead, P) f32: real rows, then imag
        # rows.  One fused XLA pass (real/imag extract + concat); no padding.
        lead = v.shape[0]
        re = jnp.real(v).astype(jnp.float32).reshape(lead, p)
        im = jnp.imag(v).astype(jnp.float32).reshape(lead, p)
        return jnp.concatenate([re, im], axis=0)

    xs = slab(x_fft)  # (2*n_lead, P)
    ws = slab(w_fft)  # (2*w_lead, P)

    # Lane-block size: a multiple of 128 (Pallas masks the trailing partial
    # block) or the full extent; sized so the biggest ref block is ~2 MiB.
    max_lead = max(n_lead, w_lead, l_lead)
    bp = max(_LANES,
             (_TARGET_BLOCK_BYTES // (4 * 2 * max_lead)) // _LANES * _LANES)
    if p <= bp:
        bp = p  # full extent: always a legal last block dim
    grid = (pl.cdiv(p, bp),)

    def kernel(x_ref, w_ref, o_ref):
        a = x_ref[0:n_lead, :]             # Re(x)  (n_lead, bp)
        b = x_ref[n_lead:2 * n_lead, :]    # Im(x)
        c = w_ref[0:w_lead, :]             # Re(w)  (w_lead, bp)
        d = w_ref[w_lead:2 * w_lead, :]    # Im(w)
        # Leading-axis broadcast (n_lead or w_lead == 1) happens here,
        # in-register; the replicated operand never hits HBM at full size.
        o_ref[0:l_lead, :] = a * c - b * d
        o_ref[l_lead:2 * l_lead, :] = a * d + b * c

    cost = pl.CostEstimate(
        flops=6 * l_lead * p,
        transcendentals=0,
        bytes_accessed=4 * 2 * p * (n_lead + w_lead + l_lead),
    )

    out = pl.pallas_call(
        kernel,
        out_shape=jax.ShapeDtypeStruct((2 * l_lead, p), jnp.float32),
        grid=grid,
        in_specs=[
            pl.BlockSpec((2 * n_lead, bp), lambda j: (0, j)),
            pl.BlockSpec((2 * w_lead, bp), lambda j: (0, j)),
        ],
        out_specs=pl.BlockSpec((2 * l_lead, bp), lambda j: (0, j)),
        compiler_params=pltpu.CompilerParams(
            # Blocks are independent.  (On v7x, CORE_PARALLEL on this axis is
            # the knob to split the grid across both TensorCores.)
            dimension_semantics=("parallel",),
            vmem_limit_bytes=32 * 1024 * 1024,
        ),
        cost_estimate=cost,
    )(xs, ws)

    # Single fused recombine pass; no pad to strip, no crop.
    return jax.lax.complex(out[:l_lead], out[l_lead:]).reshape(bshape)


class Conv3dFFT:
    def __init__(self, in_channels, out_channels, kernel_size, stride=1,
                 padding=0, key=None):
        self.kernel_size = kernel_size
        self.stride = stride
        self.padding = padding
        key = jax.random.PRNGKey(0) if key is None else key
        # torch.randn-style deterministic init (standard normal).
        self.weight = jax.random.normal(
            key, (out_channels, in_channels, *kernel_size), dtype=jnp.float32)

    def __call__(self, x):
        p = self.padding
        s = self.stride
        # F.pad(x, (p,)*6) pads the last three (spatial) dims.
        x = jnp.pad(x, ((0, 0), (0, 0), (p, p), (p, p), (p, p)))
        dp, hp, wp = x.shape[-3:]
        # TODO(synk): the multi-axis real FFT / inverse FFT stay in XLA.
        x_fft = jnp.fft.rfftn(x, axes=(-3, -2, -1))
        w_fft = jnp.fft.rfftn(self.weight, axes=(-3, -2, -1))
        out_fft = _complex_mul_pallas(x_fft, w_fft)
        # Pass s= explicitly so odd padded spatial sizes reconstruct correctly.
        out = jnp.fft.irfftn(out_fft, s=(dp, hp, wp), axes=(-3, -2, -1))
        end = -p if p > 0 else None  # guard: p == 0 must not crop to empty
        out = out[:, :, p:end, p:end, p:end]
        out = out[:, :, ::s, ::s, ::s]
        return out


if __name__ == "__main__":
    key = jax.random.PRNGKey(0)
    kx, kw = jax.random.split(key)

    # Small shapes consistent with the module's forward.
    N, C_in, D, H, W = 2, 4, 8, 8, 8
    padding, stride = 1, 2
    C_out = 2  # == N, so the reference's broadcast multiply is well-defined
    kernel_size = (D + 2 * padding, H + 2 * padding, W + 2 * padding)

    x = jax.random.normal(kx, (N, C_in, D, H, W), dtype=jnp.float32)
    mod = Conv3dFFT(C_in, C_out, kernel_size, stride=stride,
                    padding=padding, key=kw)

    fwd = jax.jit(lambda v: mod(v))
    out = jax.block_until_ready(fwd(x))

    # Pure-JAX reference of the same semantics (Pallas multiply replaced by *).
    xp = jnp.pad(x, ((0, 0), (0, 0), (padding,) * 2, (padding,) * 2,
                     (padding,) * 2))
    dp, hp, wp = xp.shape[-3:]
    x_fft = jnp.fft.rfftn(xp, axes=(-3, -2, -1))
    w_fft = jnp.fft.rfftn(mod.weight, axes=(-3, -2, -1))
    ref = jnp.fft.irfftn(x_fft * w_fft, s=(dp, hp, wp), axes=(-3, -2, -1))
    ref = ref[:, :, padding:-padding, padding:-padding, padding:-padding]
    ref = ref[:, :, ::stride, ::stride, ::stride]

    assert out.shape == ref.shape, (out.shape, ref.shape)
    assert jnp.allclose(out, ref, atol=1e-3, rtol=1e-3)
    print("KERNEL_OK")
</pallas_src>

<mosaic_0001>
module attributes {stable_mosaic.version = 11 : i64} {
  func.func @kernel(%arg0: i32, %arg1: memref<4x2400xf32, #tpu.memory_space<vmem>>, %arg2: memref<4x2400xf32, #tpu.memory_space<vmem>>, %arg3: memref<4x2400xf32, #tpu.memory_space<vmem>>) attributes {dimension_semantics = [#tpu.dimension_semantics<parallel>], iteration_bounds = array<i64: 1>, scalar_prefetch = 0 : i64, scratch_operands = 0 : i64, tpu.core_type = #tpu.core_type<tc>, window_params = [{transform_indices = @transform_0, window_bounds = array<i64: 4, 2400>}, {transform_indices = @transform_1, window_bounds = array<i64: 4, 2400>}, {transform_indices = @transform_2, window_bounds = array<i64: 4, 2400>}]} {
    %c0 = arith.constant 0 : index
    %c0_0 = arith.constant 0 : index
    %0 = vector.load %arg1[%c0, %c0_0] : memref<4x2400xf32, #tpu.memory_space<vmem>>, vector<2x2400xf32>
    %c2 = arith.constant 2 : index
    %c0_1 = arith.constant 0 : index
    %1 = vector.load %arg1[%c2, %c0_1] : memref<4x2400xf32, #tpu.memory_space<vmem>>, vector<2x2400xf32>
    %c0_2 = arith.constant 0 : index
    %c0_3 = arith.constant 0 : index
    %2 = vector.load %arg2[%c0_2, %c0_3] : memref<4x2400xf32, #tpu.memory_space<vmem>>, vector<2x2400xf32>
    %c2_4 = arith.constant 2 : index
    %c0_5 = arith.constant 0 : index
    %3 = vector.load %arg2[%c2_4, %c0_5] : memref<4x2400xf32, #tpu.memory_space<vmem>>, vector<2x2400xf32>
    %4 = arith.mulf %0, %2 : vector<2x2400xf32>
    %5 = arith.mulf %1, %3 : vector<2x2400xf32>
    %6 = arith.subf %4, %5 : vector<2x2400xf32>
    %c0_6 = arith.constant 0 : index
    %c0_7 = arith.constant 0 : index
    %7 = vector.load %arg3[%c0_6, %c0_7] : memref<4x2400xf32, #tpu.memory_space<vmem>>, vector<2x2400xf32>
    tpu.vector_store %arg3[%c0_6, %c0_7], %6 {strides = array<i32>} : memref<4x2400xf32, #tpu.memory_space<vmem>>, vector<2x2400xf32>,
    %8 = arith.mulf %0, %3 : vector<2x2400xf32>
    %9 = arith.mulf %1, %2 : vector<2x2400xf32>
    %10 = arith.addf %8, %9 : vector<2x2400xf32>
    %c2_8 = arith.constant 2 : index
    %c0_9 = arith.constant 0 : index
    %11 = vector.load %arg3[%c2_8, %c0_9] : memref<4x2400xf32, #tpu.memory_space<vmem>>, vector<2x2400xf32>
    tpu.vector_store %arg3[%c2_8, %c0_9], %10 {strides = array<i32>} : memref<4x2400xf32, #tpu.memory_space<vmem>>, vector<2x2400xf32>,
    return
  }
  func.func @transform_0(%arg0: i32) -> (i32, i32) {
    %c0_i32 = arith.constant 0 : i32
    %c0_i32_0 = arith.constant 0 : i32
    return %c0_i32, %arg0 : i32, i32
  }
  func.func @transform_1(%arg0: i32) -> (i32, i32) {
    %c0_i32 = arith.constant 0 : i32
    %c0_i32_0 = arith.constant 0 : i32
    return %c0_i32, %arg0 : i32, i32
  }
  func.func @transform_2(%arg0: i32) -> (i32, i32) {
    %c0_i32 = arith.constant 0 : i32
    %c0_i32_0 = arith.constant 0 : i32
    return %c0_i32, %arg0 : i32, i32
  }
}

</mosaic_0001>

<llo_original>
// kernel: _lambda_.1
$region0: #{_lambda_.1}
  #allocation0 [shape = 'u32[]', space=smem, size = 0x4, offset = 0x4, fixed_abs, tag = 'smem constant byte address 0x4 - core index']
  #allocation1 [shape = 'u32[144,128]{1,0:T(1,128)}', space=vmem, size = 0x12000, scoped, tag = 'internal scratch']
  %s0 = inlined_call_operand.vmem [shape: f32[4,2400], index: 0, kind: input, shape index: {}]
  %s1 = inlined_call_operand.vmem [shape: f32[4,2400], index: 1, kind: input, shape index: {}]
  %s2 = inlined_call_operand.vmem [shape: f32[4,2400], index: 2, kind: output, shape index: {}]
  %s3 = sld [smem:[#allocation0]]
  $region18: #{_lambda_.1} parent=0
    _
  %s5 = ssub.s32 1, %s3
  %s6 = scalar_select 0, %s5, %s3
  // Predicated region
  $region2: #{_lambda_.1} parent=0 // pred_check
    _
  $region3: #{_lambda_.1} parent=0 // pred_check_branch
    %8 = sbr.rel (0) target = $region5
  $region4: #{_lambda_.1} parent=0 // pred_region
    _
  $region5: #{_lambda_.1} parent=0 // pred_fallthru
    _
  // Predicated region
  $region6: #{_lambda_.1} parent=0 // pred_check
    _
  $region7: #{_lambda_.1} parent=0 // pred_check_branch
    %10 = sbr.rel (0) target = $region9
  $region8: #{_lambda_.1} parent=0 // pred_region
    _
  $region9: #{_lambda_.1} parent=0 // pred_fallthru
    _
  %v11 = vld [vmem:[%s0] sm:$0x33]
  %v12 = vld [vmem:[%s0 + $0x8] sm:$0x33]
  %v13 = vld [vmem:[%s0 + $0x10] sm:$0x33]
  %v14 = vld [vmem:[%s0 + $0x18] sm:$0x33]
  %v15 = vld [vmem:[%s0 + $0x20] sm:$0x33]
  %v16 = vld [vmem:[%s0 + $0x28] sm:$0x33]
  %v17 = vld [vmem:[%s0 + $0x30] sm:$0x33]
  %v18 = vld [vmem:[%s0 + $0x38] sm:$0x33]
  %v19 = vld [vmem:[%s0 + $0x40] sm:$0x33]
  %v20 = vld [vmem:[%s0 + $0x48] sm:$0x3]
  %v21 = vld [vmem:[%s0] sm:$0xcc]
  %v22 = vld [vmem:[%s0 + $0x8] sm:$0xcc]
  %v23 = vld [vmem:[%s0 + $0x10] sm:$0xcc]
  %v24 = vld [vmem:[%s0 + $0x18] sm:$0xcc]
  %v25 = vld [vmem:[%s0 + $0x20] sm:$0xcc]
  %v26 = vld [vmem:[%s0 + $0x28] sm:$0xcc]
  %v27 = vld [vmem:[%s0 + $0x30] sm:$0xcc]
  %v28 = vld [vmem:[%s0 + $0x38] sm:$0xcc]
  %v29 = vld [vmem:[%s0 + $0x40] sm:$0xcc]
  %v30 = vld [vmem:[%s0 + $0x48] sm:$0xc]
  %v31 = vld [vmem:[%s1] sm:$0x33]
  %v32 = vld [vmem:[%s1 + $0x8] sm:$0x33]
  %v33 = vld [vmem:[%s1 + $0x10] sm:$0x33]
  %v34 = vld [vmem:[%s1 + $0x18] sm:$0x33]
  %v35 = vld [vmem:[%s1 + $0x20] sm:$0x33]
  %v36 = vld [vmem:[%s1 + $0x28] sm:$0x33]
  %v37 = vld [vmem:[%s1 + $0x30] sm:$0x33]
  %v38 = vld [vmem:[%s1 + $0x38] sm:$0x33]
  %v39 = vld [vmem:[%s1 + $0x40] sm:$0x33]
  %v40 = vld [vmem:[%s1 + $0x48] sm:$0x3]
  %v41 = vld [vmem:[%s1] sm:$0xcc]
  %v42 = vld [vmem:[%s1 + $0x8] sm:$0xcc]
  %v43 = vld [vmem:[%s1 + $0x10] sm:$0xcc]
  %v44 = vld [vmem:[%s1 + $0x18] sm:$0xcc]
  %v45 = vld [vmem:[%s1 + $0x20] sm:$0xcc]
  %v46 = vld [vmem:[%s1 + $0x28] sm:$0xcc]
  %v47 = vld [vmem:[%s1 + $0x30] sm:$0xcc]
  %v48 = vld [vmem:[%s1 + $0x38] sm:$0xcc]
  %v49 = vld [vmem:[%s1 + $0x40] sm:$0xcc]
  %v50 = vld [vmem:[%s1 + $0x48] sm:$0xc]
  %v51 = vmul.f32 %v11, %v31
  %v52 = vmul.f32 %v12, %v32
  %v53 = vmul.f32 %v13, %v33
  %v54 = vmul.f32 %v14, %v34
  %v55 = vmul.f32 %v15, %v35
  %v56 = vmul.f32 %v16, %v36
  %v57 = vmul.f32 %v17, %v37
  %v58 = vmul.f32 %v18, %v38
  %v59 = vmul.f32 %v19, %v39
  %v60 = vmul.f32 %v20, %v40
  %v61 = vmul.f32 %v21, %v41
  %v62 = vmul.f32 %v22, %v42
  %v63 = vmul.f32 %v23, %v43
  %v64 = vmul.f32 %v24, %v44
  %v65 = vmul.f32 %v25, %v45
  %v66 = vmul.f32 %v26, %v46
  %v67 = vmul.f32 %v27, %v47
  %v68 = vmul.f32 %v28, %v48
  %v69 = vmul.f32 %v29, %v49
  %v70 = vmul.f32 %v30, %v50
  %v81 = vrot.slane %v61, 6
  %v82 = vrot.slane %v81, 4
  %v83 = vrot.slane %v62, 6
  %v84 = vrot.slane %v83, 4
  %v85 = vrot.slane %v63, 6
  %v86 = vrot.slane %v85, 4
  %v87 = vrot.slane %v64, 6
  %v88 = vrot.slane %v87, 4
  %v89 = vrot.slane %v65, 6
  %v90 = vrot.slane %v89, 4
  %v91 = vrot.slane %v66, 6
  %v92 = vrot.slane %v91, 4
  %v93 = vrot.slane %v67, 6
  %v94 = vrot.slane %v93, 4
  %v95 = vrot.slane %v68, 6
  %v96 = vrot.slane %v95, 4
  %v97 = vrot.slane %v69, 6
  %v98 = vrot.slane %v97, 4
  %v99 = vrot.slane %v70, 6
  %v100 = vrot.slane %v99, 4
  %v111 = vsub.f32 %v51, %v82
  %v112 = vsub.f32 %v52, %v84
  %v113 = vsub.f32 %v53, %v86
  %v114 = vsub.f32 %v54, %v88
  %v115 = vsub.f32 %v55, %v90
  %v116 = vsub.f32 %v56, %v92
  %v117 = vsub.f32 %v57, %v94
  %v118 = vsub.f32 %v58, %v96
  %v119 = vsub.f32 %v59, %v98
  %v120 = vsub.f32 %v60, %v100
  %121 = vst [vmem:[%s2] sm:$0x33] %v111
  %122 = vst [vmem:[%s2 + $0x8] sm:$0x33] %v112
  %123 = vst [vmem:[%s2 + $0x10] sm:$0x33] %v113
  %124 = vst [vmem:[%s2 + $0x18] sm:$0x33] %v114
  %125 = vst [vmem:[%s2 + $0x20] sm:$0x33] %v115
  %126 = vst [vmem:[%s2 + $0x28] sm:$0x33] %v116
  %127 = vst [vmem:[%s2 + $0x30] sm:$0x33] %v117
  %128 = vst [vmem:[%s2 + $0x38] sm:$0x33] %v118
  %129 = vst [vmem:[%s2 + $0x40] sm:$0x33] %v119
  %vm130 = vcmask 779264
  %131 = vst.msk [vmem:[%s2 + $0x48] sm:$0x3] %vm130, %v120
  %v142 = vrot.slane %v41, 6
  %v143 = vrot.slane %v142, 4
  %v144 = vrot.slane %v42, 6
  %v145 = vrot.slane %v144, 4
  %v146 = vrot.slane %v43, 6
  %v147 = vrot.slane %v146, 4
  %v148 = vrot.slane %v44, 6
  %v149 = vrot.slane %v148, 4
  %v150 = vrot.slane %v45, 6
  %v151 = vrot.slane %v150, 4
  %v152 = vrot.slane %v46, 6
  %v153 = vrot.slane %v152, 4
  %v154 = vrot.slane %v47, 6
  %v155 = vrot.slane %v154, 4
  %v156 = vrot.slane %v48, 6
  %v157 = vrot.slane %v156, 4
  %v158 = vrot.slane %v49, 6
  %v159 = vrot.slane %v158, 4
  %v160 = vrot.slane %v50, 6
  %v161 = vrot.slane %v160, 4
  %v172 = vmul.f32 %v11, %v143
  %v173 = vmul.f32 %v12, %v145
  %v174 = vmul.f32 %v13, %v147
  %v175 = vmul.f32 %v14, %v149
  %v176 = vmul.f32 %v15, %v151
  %v177 = vmul.f32 %v16, %v153
  %v178 = vmul.f32 %v17, %v155
  %v179 = vmul.f32 %v18, %v157
  %v180 = vmul.f32 %v19, %v159
  %v181 = vmul.f32 %v20, %v161
  %v192 = vrot.slane %v31, 6
  %v193 = vrot.slane %v32, 6
  %v194 = vrot.slane %v33, 6
  %v195 = vrot.slane %v34, 6
  %v196 = vrot.slane %v35, 6
  %v197 = vrot.slane %v36, 6
  %v198 = vrot.slane %v37, 6
  %v199 = vrot.slane %v38, 6
  %v200 = vrot.slane %v39, 6
  %v201 = vrot.slane %v40, 6
  %v212 = vmul.f32 %v21, %v192
  %v213 = vmul.f32 %v22, %v193
  %v214 = vmul.f32 %v23, %v194
  %v215 = vmul.f32 %v24, %v195
  %v216 = vmul.f32 %v25, %v196
  %v217 = vmul.f32 %v26, %v197
  %v218 = vmul.f32 %v27, %v198
  %v219 = vmul.f32 %v28, %v199
  %v220 = vmul.f32 %v29, %v200
  %v221 = vmul.f32 %v30, %v201
  %v232 = vrot.slane %v212, 6
  %v233 = vrot.slane %v232, 4
  %v234 = vrot.slane %v213, 6
  %v235 = vrot.slane %v234, 4
  %v236 = vrot.slane %v214, 6
  %v237 = vrot.slane %v236, 4
  %v238 = vrot.slane %v215, 6
  %v239 = vrot.slane %v238, 4
  %v240 = vrot.slane %v216, 6
  %v241 = vrot.slane %v240, 4
  %v242 = vrot.slane %v217, 6
  %v243 = vrot.slane %v242, 4
  %v244 = vrot.slane %v218, 6
  %v245 = vrot.slane %v244, 4
  %v246 = vrot.slane %v219, 6
  %v247 = vrot.slane %v246, 4
  %v248 = vrot.slane %v220, 6
  %v249 = vrot.slane %v248, 4
  %v250 = vrot.slane %v221, 6
  %v251 = vrot.slane %v250, 4
  %v262 = vadd.f32 %v172, %v233
  %v263 = vadd.f32 %v173, %v235
  %v264 = vadd.f32 %v174, %v237
  %v265 = vadd.f32 %v175, %v239
  %v266 = vadd.f32 %v176, %v241
  %v267 = vadd.f32 %v177, %v243
  %v268 = vadd.f32 %v178, %v245
  %v269 = vadd.f32 %v179, %v247
  %v270 = vadd.f32 %v180, %v249
  %v271 = vadd.f32 %v181, %v251
  %v282 = vrot.slane %v262, 6
  %v283 = vrot.slane %v263, 6
  %v284 = vrot.slane %v264, 6
  %v285 = vrot.slane %v265, 6
  %v286 = vrot.slane %v266, 6
  %v287 = vrot.slane %v267, 6
  %v288 = vrot.slane %v268, 6
  %v289 = vrot.slane %v269, 6
  %v290 = vrot.slane %v270, 6
  %v291 = vrot.slane %v271, 6
  %302 = vst [vmem:[%s2] sm:$0xcc] %v282
  %303 = vst [vmem:[%s2 + $0x8] sm:$0xcc] %v283
  %304 = vst [vmem:[%s2 + $0x10] sm:$0xcc] %v284
  %305 = vst [vmem:[%s2 + $0x18] sm:$0xcc] %v285
  %306 = vst [vmem:[%s2 + $0x20] sm:$0xcc] %v286
  %307 = vst [vmem:[%s2 + $0x28] sm:$0xcc] %v287
  %308 = vst [vmem:[%s2 + $0x30] sm:$0xcc] %v288
  %309 = vst [vmem:[%s2 + $0x38] sm:$0xcc] %v289
  %310 = vst [vmem:[%s2 + $0x40] sm:$0xcc] %v290
  %vm311 = vcmask 781314
  %312 = vst.msk [vmem:[%s2 + $0x48] sm:$0xc] %vm311, %v291
  // Predicated region
  $region10: #{_lambda_.1} parent=0 // pred_check
    _
  $region11: #{_lambda_.1} parent=0 // pred_check_branch
    %314 = sbr.rel (0) target = $region13
  $region12: #{_lambda_.1} parent=0 // pred_region
    _
  $region13: #{_lambda_.1} parent=0 // pred_fallthru
    _
  // Predicated region
  $region14: #{_lambda_.1} parent=0 // pred_check
    _
  $region15: #{_lambda_.1} parent=0 // pred_check_branch
    %316 = sbr.rel (0) target = $region17
  $region16: #{_lambda_.1} parent=0 // pred_region
    _
  $region17: #{_lambda_.1} parent=0 // pred_fallthru
    _

// kernel: reverse.1
$region0: #{reverse.1}
  #allocation0 [shape = 's32[1]{0}', space=sflag, size = 0x4, scoped, tag = 'scoped memory for reverse.1']
  %s0 = inlined_call_operand.vmem [shape: f32[2,4,10,10,4], index: 0, kind: input, shape index: {}]
  %s1 = inlined_call_operand.vmem [shape: f32[2,4,10,10,4], index: 1, kind: output, shape index: {}]
  %s2 = scalar_lea.vmem %s0, 48
  %v3 = vld [vmem:[%s2] sm:$0xff]
  %4 = vst [vmem:[%s1] sm:$0xff] %v3
  %s5 = scalar_lea.vmem %s0, 304
  %v6 = vld [vmem:[%s5] sm:$0xff]
  %s7 = scalar_lea.vmem %s1, 256
  %8 = vst [vmem:[%s7] sm:$0xff] %v6
  %s9 = scalar_lea.vmem %s0, 112
  %v10 = vld [vmem:[%s9] sm:$0xff]
  %s11 = scalar_lea.vmem %s1, 64
  %12 = vst [vmem:[%s11] sm:$0xff] %v10
  %s13 = scalar_lea.vmem %s0, 368
  %v14 = vld [vmem:[%s13] sm:$0xff]
  %s15 = scalar_lea.vmem %s1, 320
  %16 = vst [vmem:[%s15] sm:$0xff] %v14
  %s17 = scalar_lea.vmem %s0, 176
  %v18 = vld [vmem:[%s17] sm:$0xff]
  %s19 = scalar_lea.vmem %s1, 128
  %20 = vst [vmem:[%s19] sm:$0xff] %v18
  %s21 = scalar_lea.vmem %s0, 432
  %v22 = vld [vmem:[%s21] sm:$0xff]
  %s23 = scalar_lea.vmem %s1, 384
  %24 = vst [vmem:[%s23] sm:$0xff] %v22
  %s25 = scalar_lea.vmem %s0, 240
  %v26 = vld [vmem:[%s25] sm:$0xff]
  %s27 = scalar_lea.vmem %s1, 192
  %28 = vst [vmem:[%s27] sm:$0xff] %v26
  %s29 = scalar_lea.vmem %s0, 496
  %v30 = vld [vmem:[%s29] sm:$0xff]
  %s31 = scalar_lea.vmem %s1, 448
  %32 = vst [vmem:[%s31] sm:$0xff] %v30
  %s33 = scalar_lea.vmem %s0, 32
  %v34 = vld [vmem:[%s33] sm:$0xff]
  %s35 = scalar_lea.vmem %s1, 16
  %36 = vst [vmem:[%s35] sm:$0xff] %v34
  %s37 = scalar_lea.vmem %s0, 288
  %v38 = vld [vmem:[%s37] sm:$0xff]
  %s39 = scalar_lea.vmem %s1, 272
  %40 = vst [vmem:[%s39] sm:$0xff] %v38
  %s41 = scalar_lea.vmem %s0, 96
  %v42 = vld [vmem:[%s41] sm:$0xff]
  %s43 = scalar_lea.vmem %s1, 80
  %44 = vst [vmem:[%s43] sm:$0xff] %v42
  %s45 = scalar_lea.vmem %s0, 352
  %v46 = vld [vmem:[%s45] sm:$0xff]
  %s47 = scalar_lea.vmem %s1, 336
  %48 = vst [vmem:[%s47] sm:$0xff] %v46
  %s49 = scalar_lea.vmem %s0, 160
  %v50 = vld [vmem:[%s49] sm:$0xff]
  %s51 = scalar_lea.vmem %s1, 144
  %52 = vst [vmem:[%s51] sm:$0xff] %v50
  %s53 = scalar_lea.vmem %s0, 416
  %v54 = vld [vmem:[%s53] sm:$0xff]
  %s55 = scalar_lea.vmem %s1, 400
  %56 = vst [vmem:[%s55] sm:$0xff] %v54
  %s57 = scalar_lea.vmem %s0, 224
  %v58 = vld [vmem:[%s57] sm:$0xff]
  %s59 = scalar_lea.vmem %s1, 208
  %60 = vst [vmem:[%s59] sm:$0xff] %v58
  %s61 = scalar_lea.vmem %s0, 480
  %v62 = vld [vmem:[%s61] sm:$0xff]
  %s63 = scalar_lea.vmem %s1, 464
  %64 = vst [vmem:[%s63] sm:$0xff] %v62
  %s65 = scalar_lea.vmem %s0, 16
  %v66 = vld [vmem:[%s65] sm:$0xff]
  %s67 = scalar_lea.vmem %s1, 32
  %68 = vst [vmem:[%s67] sm:$0xff] %v66
  %s69 = scalar_lea.vmem %s0, 272
  %v70 = vld [vmem:[%s69] sm:$0xff]
  %s71 = scalar_lea.vmem %s1, 288
  %72 = vst [vmem:[%s71] sm:$0xff] %v70
  %s73 = scalar_lea.vmem %s0, 80
  %v74 = vld [vmem:[%s73] sm:$0xff]
  %s75 = scalar_lea.vmem %s1, 96
  %76 = vst [vmem:[%s75] sm:$0xff] %v74
  %s77 = scalar_lea.vmem %s0, 336
  %v78 = vld [vmem:[%s77] sm:$0xff]
  %s79 = scalar_lea.vmem %s1, 352
  %80 = vst [vmem:[%s79] sm:$0xff] %v78
  %s81 = scalar_lea.vmem %s0, 144
  %v82 = vld [vmem:[%s81] sm:$0xff]
  %s83 = scalar_lea.vmem %s1, 160
  %84 = vst [vmem:[%s83] sm:$0xff] %v82
  %s85 = scalar_lea.vmem %s0, 400
  %v86 = vld [vmem:[%s85] sm:$0xff]
  %s87 = scalar_lea.vmem %s1, 416
  %88 = vst [vmem:[%s87] sm:$0xff] %v86
  %s89 = scalar_lea.vmem %s0, 208
  %v90 = vld [vmem:[%s89] sm:$0xff]
  %s91 = scalar_lea.vmem %s1, 224
  %92 = vst [vmem:[%s91] sm:$0xff] %v90
  %s93 = scalar_lea.vmem %s0, 464
  %v94 = vld [vmem:[%s93] sm:$0xff]
  %s95 = scalar_lea.vmem %s1, 480
  %96 = vst [vmem:[%s95] sm:$0xff] %v94
  %v97 = vld [vmem:[%s0] sm:$0xff]
  %s98 = scalar_lea.vmem %s1, 48
  %99 = vst [vmem:[%s98] sm:$0xff] %v97
  %s100 = scalar_lea.vmem %s0, 256
  %v101 = vld [vmem:[%s100] sm:$0xff]
  %s102 = scalar_lea.vmem %s1, 304
  %103 = vst [vmem:[%s102] sm:$0xff] %v101
  %s104 = scalar_lea.vmem %s0, 64
  %v105 = vld [vmem:[%s104] sm:$0xff]
  %s106 = scalar_lea.vmem %s1, 112
  %107 = vst [vmem:[%s106] sm:$0xff] %v105
  %s108 = scalar_lea.vmem %s0, 320
  %v109 = vld [vmem:[%s108] sm:$0xff]
  %s110 = scalar_lea.vmem %s1, 368
  %111 = vst [vmem:[%s110] sm:$0xff] %v109
  %s112 = scalar_lea.vmem %s0, 128
  %v113 = vld [vmem:[%s112] sm:$0xff]
  %s114 = scalar_lea.vmem %s1, 176
  %115 = vst [vmem:[%s114] sm:$0xff] %v113
  %s116 = scalar_lea.vmem %s0, 384
  %v117 = vld [vmem:[%s116] sm:$0xff]
  %s118 = scalar_lea.vmem %s1, 432
  %119 = vst [vmem:[%s118] sm:$0xff] %v117
  %s120 = scalar_lea.vmem %s0, 192
  %v121 = vld [vmem:[%s120] sm:$0xff]
  %s122 = scalar_lea.vmem %s1, 240
  %123 = vst [vmem:[%s122] sm:$0xff] %v121
  %s124 = scalar_lea.vmem %s0, 448
  %v125 = vld [vmem:[%s124] sm:$0xff]
  %s126 = scalar_lea.vmem %s1, 496
  %127 = vst [vmem:[%s126] sm:$0xff] %v125
  %s128 = scalar_lea.vmem %s0, 56
  %v129 = vld [vmem:[%s128] sm:$0xff]
  %s130 = scalar_lea.vmem %s1, 8
  %131 = vst [vmem:[%s130] sm:$0xff] %v129
  %s132 = scalar_lea.vmem %s0, 312
  %v133 = vld [vmem:[%s132] sm:$0xff]
  %s134 = scalar_lea.vmem %s1, 264
  %135 = vst [vmem:[%s134] sm:$0xff] %v133
  %s136 = scalar_lea.vmem %s0, 120
  %v137 = vld [vmem:[%s136] sm:$0xff]
  %s138 = scalar_lea.vmem %s1, 72
  %139 = vst [vmem:[%s138] sm:$0xff] %v137
  %s140 = scalar_lea.vmem %s0, 376
  %v141 = vld [vmem:[%s140] sm:$0xff]
  %s142 = scalar_lea.vmem %s1, 328
  %143 = vst [vmem:[%s142] sm:$0xff] %v141
  %s144 = scalar_lea.vmem %s0, 184
  %v145 = vld [vmem:[%s144] sm:$0xff]
  %s146 = scalar_lea.vmem %s1, 136
  %147 = vst [vmem:[%s146] sm:$0xff] %v145
  %s148 = scalar_lea.vmem %s0, 440
  %v149 = vld [vmem:[%s148] sm:$0xff]
  %s150 = scalar_lea.vmem %s1, 392
  %151 = vst [vmem:[%s150] sm:$0xff] %v149
  %s152 = scalar_lea.vmem %s0, 248
  %v153 = vld [vmem:[%s152] sm:$0xff]
  %s154 = scalar_lea.vmem %s1, 200
  %155 = vst [vmem:[%s154] sm:$0xff] %v153
  %s156 = scalar_lea.vmem %s0, 504
  %v157 = vld [vmem:[%s156] sm:$0xff]
  %s158 = scalar_lea.vmem %s1, 456
  %159 = vst [vmem:[%s158] sm:$0xff] %v157
  %s160 = scalar_lea.vmem %s0, 40
  %v161 = vld [vmem:[%s160] sm:$0xff]
  %s162 = scalar_lea.vmem %s1, 24
  %163 = vst [vmem:[%s162] sm:$0xff] %v161
  %s164 = scalar_lea.vmem %s0, 296
  %v165 = vld [vmem:[%s164] sm:$0xff]
  %s166 = scalar_lea.vmem %s1, 280
  %167 = vst [vmem:[%s166] sm:$0xff] %v165
  %s168 = scalar_lea.vmem %s0, 104
  %v169 = vld [vmem:[%s168] sm:$0xff]
  %s170 = scalar_lea.vmem %s1, 88
  %171 = vst [vmem:[%s170] sm:$0xff] %v169
  %s172 = scalar_lea.vmem %s0, 360
  %v173 = vld [vmem:[%s172] sm:$0xff]
  %s174 = scalar_lea.vmem %s1, 344
  %175 = vst [vmem:[%s174] sm:$0xff] %v173
  %s176 = scalar_lea.vmem %s0, 168
  %v177 = vld [vmem:[%s176] sm:$0xff]
  %s178 = scalar_lea.vmem %s1, 152
  %179 = vst [vmem:[%s178] sm:$0xff] %v177
  %s180 = scalar_lea.vmem %s0, 424
  %v181 = vld [vmem:[%s180] sm:$0xff]
  %s182 = scalar_lea.vmem %s1, 408
  %183 = vst [vmem:[%s182] sm:$0xff] %v181
  %s184 = scalar_lea.vmem %s0, 232
  %v185 = vld [vmem:[%s184] sm:$0xff]
  %s186 = scalar_lea.vmem %s1, 216
  %187 = vst [vmem:[%s186] sm:$0xff] %v185
  %s188 = scalar_lea.vmem %s0, 488
  %v189 = vld [vmem:[%s188] sm:$0xff]
  %s190 = scalar_lea.vmem %s1, 472
  %191 = vst [vmem:[%s190] sm:$0xff] %v189
  %s192 = scalar_lea.vmem %s0, 24
  %v193 = vld [vmem:[%s192] sm:$0xff]
  %s194 = scalar_lea.vmem %s1, 40
  %195 = vst [vmem:[%s194] sm:$0xff] %v193
  %s196 = scalar_lea.vmem %s0, 280
  %v197 = vld [vmem:[%s196] sm:$0xff]
  %s198 = scalar_lea.vmem %s1, 296
  %199 = vst [vmem:[%s198] sm:$0xff] %v197
  %s200 = scalar_lea.vmem %s0, 88
  %v201 = vld [vmem:[%s200] sm:$0xff]
  %s202 = scalar_lea.vmem %s1, 104
  %203 = vst [vmem:[%s202] sm:$0xff] %v201
  %s204 = scalar_lea.vmem %s0, 344
  %v205 = vld [vmem:[%s204] sm:$0xff]
  %s206 = scalar_lea.vmem %s1, 360
  %207 = vst [vmem:[%s206] sm:$0xff] %v205
  %s208 = scalar_lea.vmem %s0, 152
  %v209 = vld [vmem:[%s208] sm:$0xff]
  %s210 = scalar_lea.vmem %s1, 168
  %211 = vst [vmem:[%s210] sm:$0xff] %v209
  %s212 = scalar_lea.vmem %s0, 408
  %v213 = vld [vmem:[%s212] sm:$0xff]
  %s214 = scalar_lea.vmem %s1, 424
  %215 = vst [vmem:[%s214] sm:$0xff] %v213
  %s216 = scalar_lea.vmem %s0, 216
  %v217 = vld [vmem:[%s216] sm:$0xff]
  %s218 = scalar_lea.vmem %s1, 232
  %219 = vst [vmem:[%s218] sm:$0xff] %v217
  %s220 = scalar_lea.vmem %s0, 472
  %v221 = vld [vmem:[%s220] sm:$0xff]
  %s222 = scalar_lea.vmem %s1, 488
  %223 = vst [vmem:[%s222] sm:$0xff] %v221
  %s224 = scalar_lea.vmem %s0, 8
  %v225 = vld [vmem:[%s224] sm:$0xff]
  %s226 = scalar_lea.vmem %s1, 56
  %227 = vst [vmem:[%s226] sm:$0xff] %v225
  %s228 = scalar_lea.vmem %s0, 264
  %v229 = vld [vmem:[%s228] sm:$0xff]
  %s230 = scalar_lea.vmem %s1, 312
  %231 = vst [vmem:[%s230] sm:$0xff] %v229
  %s232 = scalar_lea.vmem %s0, 72
  %v233 = vld [vmem:[%s232] sm:$0xff]
  %s234 = scalar_lea.vmem %s1, 120
  %235 = vst [vmem:[%s234] sm:$0xff] %v233
  %s236 = scalar_lea.vmem %s0, 328
  %v237 = vld [vmem:[%s236] sm:$0xff]
  %s238 = scalar_lea.vmem %s1, 376
  %239 = vst [vmem:[%s238] sm:$0xff] %v237
  %s240 = scalar_lea.vmem %s0, 136
  %v241 = vld [vmem:[%s240] sm:$0xff]
  %s242 = scalar_lea.vmem %s1, 184
  %243 = vst [vmem:[%s242] sm:$0xff] %v241
  %s244 = scalar_lea.vmem %s0, 392
  %v245 = vld [vmem:[%s244] sm:$0xff]
  %s246 = scalar_lea.vmem %s1, 440
  %247 = vst [vmem:[%s246] sm:$0xff] %v245
  %s248 = scalar_lea.vmem %s0, 200
  %v249 = vld [vmem:[%s248] sm:$0xff]
  %s250 = scalar_lea.vmem %s1, 248
  %251 = vst [vmem:[%s250] sm:$0xff] %v249
  %s252 = scalar_lea.vmem %s0, 456
  %v253 = vld [vmem:[%s252] sm:$0xff]
  %s254 = scalar_lea.vmem %s1, 504
  %255 = vst [vmem:[%s254] sm:$0xff] %v253

</llo_original>
